<compile_context>
chip_gen: v6e
topology: v6e:2x2x1
jax: 0.10.0
libtpu: 0.0.40
codegen_flags: <defaults>
</compile_context>

<pallas_src>
import jax
import jax.numpy as jnp
from jax.experimental import pallas as pl
from jax.experimental.pallas import tpu as pltpu

N = 3
NUM_FEATURES = 2 * N + 2   # 8
HIDDEN = N + 1             # 4
NUM_X = 32                 # batch of sample points

# Offsets into the packed 1-D parameter table (SMEM).
_W1_OFF = 0                                   # w1: (H, F) row-major, 32 floats
_B1_OFF = _W1_OFF + HIDDEN * NUM_FEATURES     # b1: 4 floats
_W2_OFF = _B1_OFF + HIDDEN                    # w2: 4 floats
_B2_OFF = _W2_OFF + HIDDEN                    # b2: 1 float
_NPARAMS = _B2_OFF + 1                        # 41 floats total


def simple_nn_kernel(xt_ref, p_ref, o_ref):
    # xt_ref: (F, B) f32 VMEM  -- batch in the lane dimension
    # p_ref : (41,)  f32 SMEM  -- packed [w1 | b1 | w2 | b2]
    # o_ref : (1, B) f32 VMEM  -- lane-dense output
    #
    # Load |x| row by row: 8 sublane loads of (1, B), all fp32, all VPU work.
    xa_rows = [jnp.abs(xt_ref[i:i + 1, :]) for i in range(NUM_FEATURES)]

    y = None
    for j in range(HIDDEN):
        # Hidden unit j: 8 scalar-broadcast FMAs on the VPU.
        hj = p_ref[_W1_OFF + j * NUM_FEATURES] * xa_rows[0]
        for i in range(1, NUM_FEATURES):
            hj = hj + p_ref[_W1_OFF + j * NUM_FEATURES + i] * xa_rows[i]
        # relu(hidden(|x|)); abs() after relu is a mathematical no-op, dropped.
        hj = jnp.maximum(hj + p_ref[_B1_OFF + j], 0.0)
        # Output layer fused in as one more scalar-broadcast FMA (no 2nd matmul).
        contrib = p_ref[_W2_OFF + j] * hj
        y = contrib if y is None else y + contrib

    o_ref[...] = jnp.maximum(y + p_ref[_B2_OFF], 0.0).astype(o_ref.dtype)


def simple_nn_forward(x, w1, b1, w2, b2):
    """x: (B, F) f32; w1: (H, F); b1: (H,); w2: (H,); b2: (1,).  Returns (B, 1)."""
    B = x.shape[0]
    xt = x.T  # (F, B): put the batch in the lane dimension (wrapper-side plumbing)

    # Pack all parameters into one flat SMEM table -> one DMA instead of four.
    params = jnp.concatenate(
        [w1.reshape(-1), b1.reshape(-1), w2.reshape(-1), b2.reshape(-1)]
    ).astype(jnp.float32)

    vmem = pl.BlockSpec(memory_space=pltpu.MemorySpace.VMEM)
    smem = pl.BlockSpec(memory_space=pltpu.MemorySpace.SMEM)

    yt = pl.pallas_call(
        simple_nn_kernel,
        out_shape=jax.ShapeDtypeStruct((1, B), jnp.float32),
        in_specs=[vmem, smem],
        out_specs=vmem,
    )(xt, params)

    return yt.T  # (B, 1) to match the PyTorch module's output shape


def init_params(key):
    """Deterministic init mimicking nn.Linear's U(-1/sqrt(fan_in), 1/sqrt(fan_in)),
    stored in PyTorch (out, in) layout."""
    k1, k2, k3, k4 = jax.random.split(key, 4)
    bound1 = 1.0 / (NUM_FEATURES ** 0.5)
    bound2 = 1.0 / (HIDDEN ** 0.5)
    w1 = jax.random.uniform(k1, (HIDDEN, NUM_FEATURES), jnp.float32,
                            minval=-bound1, maxval=bound1)
    b1 = jax.random.uniform(k2, (HIDDEN,), jnp.float32,
                            minval=-bound1, maxval=bound1)
    w2 = jax.random.uniform(k3, (HIDDEN,), jnp.float32,
                            minval=-bound2, maxval=bound2)
    b2 = jax.random.uniform(k4, (1,), jnp.float32,
                            minval=-bound2, maxval=bound2)
    return w1, b1, w2, b2


def reference_forward(x, w1, b1, w2, b2):
    h = jnp.maximum(jnp.abs(x) @ w1.T + b1, 0.0)
    y = jnp.maximum(jnp.abs(h) @ w2.reshape(HIDDEN, 1) + b2, 0.0)
    return y


if __name__ == "__main__":
    key = jax.random.PRNGKey(0)
    kx, kp = jax.random.split(key)

    # Small deterministic input batch: 32 points, 8 features each.
    x = jax.random.normal(kx, (NUM_X, NUM_FEATURES), dtype=jnp.float32)
    w1, b1, w2, b2 = init_params(kp)

    out = simple_nn_forward(x, w1, b1, w2, b2)
    out = jax.block_until_ready(out)

    ref = reference_forward(x, w1, b1, w2, b2)
    assert out.shape == (NUM_X, 1), out.shape
    assert jnp.allclose(out, ref, atol=1e-5, rtol=1e-5), "mismatch vs JAX reference"

    print("KERNEL_OK")
</pallas_src>

<mosaic_0001>
module attributes {stable_mosaic.version = 11 : i64} {
  func.func @simple_nn_kernel(%arg0: memref<8x32xf32, #tpu.memory_space<vmem>>, %arg1: memref<41xf32, #tpu.memory_space<smem>>, %arg2: memref<1x32xf32, #tpu.memory_space<vmem>>) attributes {dimension_semantics = [], scalar_prefetch = 0 : i64, scratch_operands = 0 : i64, tpu.core_type = #tpu.core_type<tc>} {
    %c0 = arith.constant 0 : index
    %c0_0 = arith.constant 0 : index
    %0 = vector.load %arg0[%c0, %c0_0] : memref<8x32xf32, #tpu.memory_space<vmem>>, vector<1x32xf32>
    %1 = math.absf %0 : vector<1x32xf32>
    %c1 = arith.constant 1 : index
    %c0_1 = arith.constant 0 : index
    %2 = vector.load %arg0[%c1, %c0_1] : memref<8x32xf32, #tpu.memory_space<vmem>>, vector<1x32xf32>
    %3 = math.absf %2 : vector<1x32xf32>
    %c2 = arith.constant 2 : index
    %c0_2 = arith.constant 0 : index
    %4 = vector.load %arg0[%c2, %c0_2] : memref<8x32xf32, #tpu.memory_space<vmem>>, vector<1x32xf32>
    %5 = math.absf %4 : vector<1x32xf32>
    %c3 = arith.constant 3 : index
    %c0_3 = arith.constant 0 : index
    %6 = vector.load %arg0[%c3, %c0_3] : memref<8x32xf32, #tpu.memory_space<vmem>>, vector<1x32xf32>
    %7 = math.absf %6 : vector<1x32xf32>
    %c4 = arith.constant 4 : index
    %c0_4 = arith.constant 0 : index
    %8 = vector.load %arg0[%c4, %c0_4] : memref<8x32xf32, #tpu.memory_space<vmem>>, vector<1x32xf32>
    %9 = math.absf %8 : vector<1x32xf32>
    %c5 = arith.constant 5 : index
    %c0_5 = arith.constant 0 : index
    %10 = vector.load %arg0[%c5, %c0_5] : memref<8x32xf32, #tpu.memory_space<vmem>>, vector<1x32xf32>
    %11 = math.absf %10 : vector<1x32xf32>
    %c6 = arith.constant 6 : index
    %c0_6 = arith.constant 0 : index
    %12 = vector.load %arg0[%c6, %c0_6] : memref<8x32xf32, #tpu.memory_space<vmem>>, vector<1x32xf32>
    %13 = math.absf %12 : vector<1x32xf32>
    %c7 = arith.constant 7 : index
    %c0_7 = arith.constant 0 : index
    %14 = vector.load %arg0[%c7, %c0_7] : memref<8x32xf32, #tpu.memory_space<vmem>>, vector<1x32xf32>
    %15 = math.absf %14 : vector<1x32xf32>
    %c0_8 = arith.constant 0 : index
    %16 = memref.load %arg1[%c0_8] : memref<41xf32, #tpu.memory_space<smem>>
    %17 = vector.broadcast %16 : f32 to vector<1x32xf32>
    %18 = arith.mulf %17, %1 : vector<1x32xf32>
    %c1_9 = arith.constant 1 : index
    %19 = memref.load %arg1[%c1_9] : memref<41xf32, #tpu.memory_space<smem>>
    %20 = vector.broadcast %19 : f32 to vector<1x32xf32>
    %21 = arith.mulf %20, %3 : vector<1x32xf32>
    %22 = arith.addf %18, %21 : vector<1x32xf32>
    %c2_10 = arith.constant 2 : index
    %23 = memref.load %arg1[%c2_10] : memref<41xf32, #tpu.memory_space<smem>>
    %24 = vector.broadcast %23 : f32 to vector<1x32xf32>
    %25 = arith.mulf %24, %5 : vector<1x32xf32>
    %26 = arith.addf %22, %25 : vector<1x32xf32>
    %c3_11 = arith.constant 3 : index
    %27 = memref.load %arg1[%c3_11] : memref<41xf32, #tpu.memory_space<smem>>
    %28 = vector.broadcast %27 : f32 to vector<1x32xf32>
    %29 = arith.mulf %28, %7 : vector<1x32xf32>
    %30 = arith.addf %26, %29 : vector<1x32xf32>
    %c4_12 = arith.constant 4 : index
    %31 = memref.load %arg1[%c4_12] : memref<41xf32, #tpu.memory_space<smem>>
    %32 = vector.broadcast %31 : f32 to vector<1x32xf32>
    %33 = arith.mulf %32, %9 : vector<1x32xf32>
    %34 = arith.addf %30, %33 : vector<1x32xf32>
    %c5_13 = arith.constant 5 : index
    %35 = memref.load %arg1[%c5_13] : memref<41xf32, #tpu.memory_space<smem>>
    %36 = vector.broadcast %35 : f32 to vector<1x32xf32>
    %37 = arith.mulf %36, %11 : vector<1x32xf32>
    %38 = arith.addf %34, %37 : vector<1x32xf32>
    %c6_14 = arith.constant 6 : index
    %39 = memref.load %arg1[%c6_14] : memref<41xf32, #tpu.memory_space<smem>>
    %40 = vector.broadcast %39 : f32 to vector<1x32xf32>
    %41 = arith.mulf %40, %13 : vector<1x32xf32>
    %42 = arith.addf %38, %41 : vector<1x32xf32>
    %c7_15 = arith.constant 7 : index
    %43 = memref.load %arg1[%c7_15] : memref<41xf32, #tpu.memory_space<smem>>
    %44 = vector.broadcast %43 : f32 to vector<1x32xf32>
    %45 = arith.mulf %44, %15 : vector<1x32xf32>
    %46 = arith.addf %42, %45 : vector<1x32xf32>
    %c32 = arith.constant 32 : index
    %47 = memref.load %arg1[%c32] : memref<41xf32, #tpu.memory_space<smem>>
    %48 = vector.broadcast %47 : f32 to vector<1x32xf32>
    %49 = arith.addf %46, %48 : vector<1x32xf32>
    %cst = arith.constant 0.000000e+00 : f32
    %50 = vector.broadcast %cst : f32 to vector<1x32xf32>
    %51 = arith.maximumf %49, %50 : vector<1x32xf32>
    %c36 = arith.constant 36 : index
    %52 = memref.load %arg1[%c36] : memref<41xf32, #tpu.memory_space<smem>>
    %53 = vector.broadcast %52 : f32 to vector<1x32xf32>
    %54 = arith.mulf %53, %51 : vector<1x32xf32>
    %c8 = arith.constant 8 : index
    %55 = memref.load %arg1[%c8] : memref<41xf32, #tpu.memory_space<smem>>
    %56 = vector.broadcast %55 : f32 to vector<1x32xf32>
    %57 = arith.mulf %56, %1 : vector<1x32xf32>
    %c9 = arith.constant 9 : index
    %58 = memref.load %arg1[%c9] : memref<41xf32, #tpu.memory_space<smem>>
    %59 = vector.broadcast %58 : f32 to vector<1x32xf32>
    %60 = arith.mulf %59, %3 : vector<1x32xf32>
    %61 = arith.addf %57, %60 : vector<1x32xf32>
    %c10 = arith.constant 10 : index
    %62 = memref.load %arg1[%c10] : memref<41xf32, #tpu.memory_space<smem>>
    %63 = vector.broadcast %62 : f32 to vector<1x32xf32>
    %64 = arith.mulf %63, %5 : vector<1x32xf32>
    %65 = arith.addf %61, %64 : vector<1x32xf32>
    %c11 = arith.constant 11 : index
    %66 = memref.load %arg1[%c11] : memref<41xf32, #tpu.memory_space<smem>>
    %67 = vector.broadcast %66 : f32 to vector<1x32xf32>
    %68 = arith.mulf %67, %7 : vector<1x32xf32>
    %69 = arith.addf %65, %68 : vector<1x32xf32>
    %c12 = arith.constant 12 : index
    %70 = memref.load %arg1[%c12] : memref<41xf32, #tpu.memory_space<smem>>
    %71 = vector.broadcast %70 : f32 to vector<1x32xf32>
    %72 = arith.mulf %71, %9 : vector<1x32xf32>
    %73 = arith.addf %69, %72 : vector<1x32xf32>
    %c13 = arith.constant 13 : index
    %74 = memref.load %arg1[%c13] : memref<41xf32, #tpu.memory_space<smem>>
    %75 = vector.broadcast %74 : f32 to vector<1x32xf32>
    %76 = arith.mulf %75, %11 : vector<1x32xf32>
    %77 = arith.addf %73, %76 : vector<1x32xf32>
    %c14 = arith.constant 14 : index
    %78 = memref.load %arg1[%c14] : memref<41xf32, #tpu.memory_space<smem>>
    %79 = vector.broadcast %78 : f32 to vector<1x32xf32>
    %80 = arith.mulf %79, %13 : vector<1x32xf32>
    %81 = arith.addf %77, %80 : vector<1x32xf32>
    %c15 = arith.constant 15 : index
    %82 = memref.load %arg1[%c15] : memref<41xf32, #tpu.memory_space<smem>>
    %83 = vector.broadcast %82 : f32 to vector<1x32xf32>
    %84 = arith.mulf %83, %15 : vector<1x32xf32>
    %85 = arith.addf %81, %84 : vector<1x32xf32>
    %c33 = arith.constant 33 : index
    %86 = memref.load %arg1[%c33] : memref<41xf32, #tpu.memory_space<smem>>
    %87 = vector.broadcast %86 : f32 to vector<1x32xf32>
    %88 = arith.addf %85, %87 : vector<1x32xf32>
    %cst_16 = arith.constant 0.000000e+00 : f32
    %89 = vector.broadcast %cst_16 : f32 to vector<1x32xf32>
    %90 = arith.maximumf %88, %89 : vector<1x32xf32>
    %c37 = arith.constant 37 : index
    %91 = memref.load %arg1[%c37] : memref<41xf32, #tpu.memory_space<smem>>
    %92 = vector.broadcast %91 : f32 to vector<1x32xf32>
    %93 = arith.mulf %92, %90 : vector<1x32xf32>
    %94 = arith.addf %54, %93 : vector<1x32xf32>
    %c16 = arith.constant 16 : index
    %95 = memref.load %arg1[%c16] : memref<41xf32, #tpu.memory_space<smem>>
    %96 = vector.broadcast %95 : f32 to vector<1x32xf32>
    %97 = arith.mulf %96, %1 : vector<1x32xf32>
    %c17 = arith.constant 17 : index
    %98 = memref.load %arg1[%c17] : memref<41xf32, #tpu.memory_space<smem>>
    %99 = vector.broadcast %98 : f32 to vector<1x32xf32>
    %100 = arith.mulf %99, %3 : vector<1x32xf32>
    %101 = arith.addf %97, %100 : vector<1x32xf32>
    %c18 = arith.constant 18 : index
    %102 = memref.load %arg1[%c18] : memref<41xf32, #tpu.memory_space<smem>>
    %103 = vector.broadcast %102 : f32 to vector<1x32xf32>
    %104 = arith.mulf %103, %5 : vector<1x32xf32>
    %105 = arith.addf %101, %104 : vector<1x32xf32>
    %c19 = arith.constant 19 : index
    %106 = memref.load %arg1[%c19] : memref<41xf32, #tpu.memory_space<smem>>
    %107 = vector.broadcast %106 : f32 to vector<1x32xf32>
    %108 = arith.mulf %107, %7 : vector<1x32xf32>
    %109 = arith.addf %105, %108 : vector<1x32xf32>
    %c20 = arith.constant 20 : index
    %110 = memref.load %arg1[%c20] : memref<41xf32, #tpu.memory_space<smem>>
    %111 = vector.broadcast %110 : f32 to vector<1x32xf32>
    %112 = arith.mulf %111, %9 : vector<1x32xf32>
    %113 = arith.addf %109, %112 : vector<1x32xf32>
    %c21 = arith.constant 21 : index
    %114 = memref.load %arg1[%c21] : memref<41xf32, #tpu.memory_space<smem>>
    %115 = vector.broadcast %114 : f32 to vector<1x32xf32>
    %116 = arith.mulf %115, %11 : vector<1x32xf32>
    %117 = arith.addf %113, %116 : vector<1x32xf32>
    %c22 = arith.constant 22 : index
    %118 = memref.load %arg1[%c22] : memref<41xf32, #tpu.memory_space<smem>>
    %119 = vector.broadcast %118 : f32 to vector<1x32xf32>
    %120 = arith.mulf %119, %13 : vector<1x32xf32>
    %121 = arith.addf %117, %120 : vector<1x32xf32>
    %c23 = arith.constant 23 : index
    %122 = memref.load %arg1[%c23] : memref<41xf32, #tpu.memory_space<smem>>
    %123 = vector.broadcast %122 : f32 to vector<1x32xf32>
    %124 = arith.mulf %123, %15 : vector<1x32xf32>
    %125 = arith.addf %121, %124 : vector<1x32xf32>
    %c34 = arith.constant 34 : index
    %126 = memref.load %arg1[%c34] : memref<41xf32, #tpu.memory_space<smem>>
    %127 = vector.broadcast %126 : f32 to vector<1x32xf32>
    %128 = arith.addf %125, %127 : vector<1x32xf32>
    %cst_17 = arith.constant 0.000000e+00 : f32
    %129 = vector.broadcast %cst_17 : f32 to vector<1x32xf32>
    %130 = arith.maximumf %128, %129 : vector<1x32xf32>
    %c38 = arith.constant 38 : index
    %131 = memref.load %arg1[%c38] : memref<41xf32, #tpu.memory_space<smem>>
    %132 = vector.broadcast %131 : f32 to vector<1x32xf32>
    %133 = arith.mulf %132, %130 : vector<1x32xf32>
    %134 = arith.addf %94, %133 : vector<1x32xf32>
    %c24 = arith.constant 24 : index
    %135 = memref.load %arg1[%c24] : memref<41xf32, #tpu.memory_space<smem>>
    %136 = vector.broadcast %135 : f32 to vector<1x32xf32>
    %137 = arith.mulf %136, %1 : vector<1x32xf32>
    %c25 = arith.constant 25 : index
    %138 = memref.load %arg1[%c25] : memref<41xf32, #tpu.memory_space<smem>>
    %139 = vector.broadcast %138 : f32 to vector<1x32xf32>
    %140 = arith.mulf %139, %3 : vector<1x32xf32>
    %141 = arith.addf %137, %140 : vector<1x32xf32>
    %c26 = arith.constant 26 : index
    %142 = memref.load %arg1[%c26] : memref<41xf32, #tpu.memory_space<smem>>
    %143 = vector.broadcast %142 : f32 to vector<1x32xf32>
    %144 = arith.mulf %143, %5 : vector<1x32xf32>
    %145 = arith.addf %141, %144 : vector<1x32xf32>
    %c27 = arith.constant 27 : index
    %146 = memref.load %arg1[%c27] : memref<41xf32, #tpu.memory_space<smem>>
    %147 = vector.broadcast %146 : f32 to vector<1x32xf32>
    %148 = arith.mulf %147, %7 : vector<1x32xf32>
    %149 = arith.addf %145, %148 : vector<1x32xf32>
    %c28 = arith.constant 28 : index
    %150 = memref.load %arg1[%c28] : memref<41xf32, #tpu.memory_space<smem>>
    %151 = vector.broadcast %150 : f32 to vector<1x32xf32>
    %152 = arith.mulf %151, %9 : vector<1x32xf32>
    %153 = arith.addf %149, %152 : vector<1x32xf32>
    %c29 = arith.constant 29 : index
    %154 = memref.load %arg1[%c29] : memref<41xf32, #tpu.memory_space<smem>>
    %155 = vector.broadcast %154 : f32 to vector<1x32xf32>
    %156 = arith.mulf %155, %11 : vector<1x32xf32>
    %157 = arith.addf %153, %156 : vector<1x32xf32>
    %c30 = arith.constant 30 : index
    %158 = memref.load %arg1[%c30] : memref<41xf32, #tpu.memory_space<smem>>
    %159 = vector.broadcast %158 : f32 to vector<1x32xf32>
    %160 = arith.mulf %159, %13 : vector<1x32xf32>
    %161 = arith.addf %157, %160 : vector<1x32xf32>
    %c31 = arith.constant 31 : index
    %162 = memref.load %arg1[%c31] : memref<41xf32, #tpu.memory_space<smem>>
    %163 = vector.broadcast %162 : f32 to vector<1x32xf32>
    %164 = arith.mulf %163, %15 : vector<1x32xf32>
    %165 = arith.addf %161, %164 : vector<1x32xf32>
    %c35 = arith.constant 35 : index
    %166 = memref.load %arg1[%c35] : memref<41xf32, #tpu.memory_space<smem>>
    %167 = vector.broadcast %166 : f32 to vector<1x32xf32>
    %168 = arith.addf %165, %167 : vector<1x32xf32>
    %cst_18 = arith.constant 0.000000e+00 : f32
    %169 = vector.broadcast %cst_18 : f32 to vector<1x32xf32>
    %170 = arith.maximumf %168, %169 : vector<1x32xf32>
    %c39 = arith.constant 39 : index
    %171 = memref.load %arg1[%c39] : memref<41xf32, #tpu.memory_space<smem>>
    %172 = vector.broadcast %171 : f32 to vector<1x32xf32>
    %173 = arith.mulf %172, %170 : vector<1x32xf32>
    %174 = arith.addf %134, %173 : vector<1x32xf32>
    %c40 = arith.constant 40 : index
    %175 = memref.load %arg1[%c40] : memref<41xf32, #tpu.memory_space<smem>>
    %176 = vector.broadcast %175 : f32 to vector<1x32xf32>
    %177 = arith.addf %174, %176 : vector<1x32xf32>
    %cst_19 = arith.constant 0.000000e+00 : f32
    %178 = vector.broadcast %cst_19 : f32 to vector<1x32xf32>
    %179 = arith.maximumf %177, %178 : vector<1x32xf32>
    %c0_20 = arith.constant 0 : index
    %c0_21 = arith.constant 0 : index
    %180 = vector.load %arg2[%c0_20, %c0_21] : memref<1x32xf32, #tpu.memory_space<vmem>>, vector<1x32xf32>
    tpu.vector_store %arg2[%c0_20, %c0_21], %179 {strides = array<i32>} : memref<1x32xf32, #tpu.memory_space<vmem>>, vector<1x32xf32>,
    return
  }
}

</mosaic_0001>

<llo_original>
// kernel: tpu_custom_call.1
$region0: #{tpu_custom_call.1}
  #allocation0 [shape = 'u32[]', space=smem, size = 0x4, offset = 0x4, fixed_abs, tag = 'smem constant byte address 0x4 - core index']
  #allocation1 [shape = 'u32[144,128]{1,0:T(1,128)}', space=vmem, size = 0x12000, scoped, tag = 'internal scratch']
  %s0 = inlined_call_operand.hbm [shape: f32[8,32], index: 0, kind: input, shape index: {}]
  %s1 = inlined_call_operand.vmem [shape: f32[41], index: 1, kind: input, shape index: {}]
  %s2 = inlined_call_operand.hbm [shape: f32[1,32], index: 2, kind: output, shape index: {}]
  %s3 = sld [smem:[#allocation0]]
  $region26: #{tpu_custom_call.1} parent=0
    _
  %s5 = ssub.s32 1, %s3
  %s6 = scalar_select 0, %s5, %s3
  $region1: #{tpu_custom_call.1} parent=0
    #allocation2 [shape = 'u8[4096]{0}', space=vmem, size = 0x1000, scoped, tag = 'input window, operand 0, single buffered']
    #allocation3 [shape = 's32[1]{0}', space=sflag, size = 0x4, scoped, tag = 'scoped memory for tpu_custom_call.1']
    #allocation4 [shape = 's32[1]{0}', space=sflag, size = 0x4, scoped, tag = 'scoped memory for tpu_custom_call.1']
    #allocation5 [shape = 's32[1]{0}', space=sflag, size = 0x4, scoped, tag = 'scoped memory for tpu_custom_call.1']
    #allocation6 [shape = 'u8[512]{0}', space=smem, size = 0x200, scoped, tag = 'input window, operand 1, single buffered']
    #allocation7 [shape = 'u8[512]{0}', space=vmem, size = 0x400, scoped, tag = 'output window, operand 0, single buffered']
    %7 = vsyncpa [#allocation3], 0
    %8 = vsyncpa [#allocation5], 0
    %9 = vsyncpa [#allocation4], 0
    // Predicated region
    $region2: #{tpu_custom_call.1} parent=1 // pred_check
      _
    $region3: #{tpu_custom_call.1} parent=1 // pred_check_branch
      %11 = sbr.rel (0) target = $region5
    $region4: #{tpu_custom_call.1} parent=1 // pred_region
      %s13 = ssub.s32 128, 128
      %14 = vsyncadd [#allocation3], %s13
      %s16 = sshll.u32 [#allocation2], 4
      %s17 = int_to_ptr.vmem [resolvable:$true] %s16
      %19 = dma.hbm_to_vmem [thread:$0]  %s0, 128, %s17, [#allocation3]
    $region5: #{tpu_custom_call.1} parent=1 // pred_fallthru
      _
    // Predicated region
    $region6: #{tpu_custom_call.1} parent=1 // pred_check
      _
    $region7: #{tpu_custom_call.1} parent=1 // pred_check_branch
      %21 = sbr.rel (0) target = $region9
    $region8: #{tpu_custom_call.1} parent=1 // pred_region
      %s23 = ssub.s32 16, 16
      %24 = vsyncadd [#allocation5], %s23
      %s26 = sshll.u32 %s1, 4
      %s27 = int_to_ptr.vmem [resolvable:$true] %s26
      %29 = dma.vmem_to_smem %s27, 16, [#allocation6], [#allocation5]
    $region9: #{tpu_custom_call.1} parent=1 // pred_fallthru
      _
    // Predicated region
    $region10: #{tpu_custom_call.1} parent=1 // pred_check
      _
    $region11: #{tpu_custom_call.1} parent=1 // pred_check_branch
      %31 = sbr.rel (0) target = $region13
    $region12: #{tpu_custom_call.1} parent=1 // pred_region
      %32 = dma.done [#allocation3], 128
    $region13: #{tpu_custom_call.1} parent=1 // pred_fallthru
      _
    // Predicated region
    $region14: #{tpu_custom_call.1} parent=1 // pred_check
      _
    $region15: #{tpu_custom_call.1} parent=1 // pred_check_branch
      %34 = sbr.rel (0) target = $region17
    $region16: #{tpu_custom_call.1} parent=1 // pred_region
      %35 = dma.done [#allocation5], 16
    $region17: #{tpu_custom_call.1} parent=1 // pred_fallthru
      _
    %36 = sfence
    %v37 = vld [vmem:[#allocation2] sm:$0x1]
    %v38 = vand.u32 2147483647, %v37
    %v39 = vld [vmem:[#allocation2 + $0x1] sm:$0x1]
    %v40 = vand.u32 2147483647, %v39
    %v41 = vld [vmem:[#allocation2 + $0x2] sm:$0x1]
    %v42 = vand.u32 2147483647, %v41
    %v43 = vld [vmem:[#allocation2 + $0x3] sm:$0x1]
    %v44 = vand.u32 2147483647, %v43
    %v45 = vld [vmem:[#allocation2 + $0x4] sm:$0x1]
    %v46 = vand.u32 2147483647, %v45
    %v47 = vld [vmem:[#allocation2 + $0x5] sm:$0x1]
    %v48 = vand.u32 2147483647, %v47
    %v49 = vld [vmem:[#allocation2 + $0x6] sm:$0x1]
    %v50 = vand.u32 2147483647, %v49
    %v51 = vld [vmem:[#allocation2 + $0x7] sm:$0x1]
    %v52 = vand.u32 2147483647, %v51
    %s53 = sld [smem:[#allocation6]]
    %v54 = vstv %s53
    %v55 = vmul.f32 %v54, %v38
    %s56 = sld [smem:[#allocation6 + $0x1]]
    %v57 = vstv %s56
    %v58 = vmul.f32 %v57, %v40
    %v59 = vadd.f32 %v55, %v58
    %s60 = sld [smem:[#allocation6 + $0x2]]
    %v61 = vstv %s60
    %v62 = vmul.f32 %v61, %v42
    %v63 = vadd.f32 %v59, %v62
    %s64 = sld [smem:[#allocation6 + $0x3]]
    %v65 = vstv %s64
    %v66 = vmul.f32 %v65, %v44
    %v67 = vadd.f32 %v63, %v66
    %s68 = sld [smem:[#allocation6 + $0x4]]
    %v69 = vstv %s68
    %v70 = vmul.f32 %v69, %v46
    %v71 = vadd.f32 %v67, %v70
    %s72 = sld [smem:[#allocation6 + $0x5]]
    %v73 = vstv %s72
    %v74 = vmul.f32 %v73, %v48
    %v75 = vadd.f32 %v71, %v74
    %s76 = sld [smem:[#allocation6 + $0x6]]
    %v77 = vstv %s76
    %v78 = vmul.f32 %v77, %v50
    %v79 = vadd.f32 %v75, %v78
    %s80 = sld [smem:[#allocation6 + $0x7]]
    %v81 = vstv %s80
    %v82 = vmul.f32 %v81, %v52
    %v83 = vadd.f32 %v79, %v82
    %s84 = sld [smem:[#allocation6 + $0x20]]
    %v85 = vstv %s84
    %v86 = vadd.f32 %v83, %v85
    %v87 = vmax.f32 %v86, 0.0
    %s88 = sld [smem:[#allocation6 + $0x24]]
    %v89 = vstv %s88
    %v90 = vmul.f32 %v89, %v87
    %s91 = sld [smem:[#allocation6 + $0x8]]
    %v92 = vstv %s91
    %v93 = vmul.f32 %v92, %v38
    %s94 = sld [smem:[#allocation6 + $0x9]]
    %v95 = vstv %s94
    %v96 = vmul.f32 %v95, %v40
    %v97 = vadd.f32 %v93, %v96
    %s98 = sld [smem:[#allocation6 + $0xa]]
    %v99 = vstv %s98
    %v100 = vmul.f32 %v99, %v42
    %v101 = vadd.f32 %v97, %v100
    %s102 = sld [smem:[#allocation6 + $0xb]]
    %v103 = vstv %s102
    %v104 = vmul.f32 %v103, %v44
    %v105 = vadd.f32 %v101, %v104
    %s106 = sld [smem:[#allocation6 + $0xc]]
    %v107 = vstv %s106
    %v108 = vmul.f32 %v107, %v46
    %v109 = vadd.f32 %v105, %v108
    %s110 = sld [smem:[#allocation6 + $0xd]]
    %v111 = vstv %s110
    %v112 = vmul.f32 %v111, %v48
    %v113 = vadd.f32 %v109, %v112
    %s114 = sld [smem:[#allocation6 + $0xe]]
    %v115 = vstv %s114
    %v116 = vmul.f32 %v115, %v50
    %v117 = vadd.f32 %v113, %v116
    %s118 = sld [smem:[#allocation6 + $0xf]]
    %v119 = vstv %s118
    %v120 = vmul.f32 %v119, %v52
    %v121 = vadd.f32 %v117, %v120
    %s122 = sld [smem:[#allocation6 + $0x21]]
    %v123 = vstv %s122
    %v124 = vadd.f32 %v121, %v123
    %v125 = vmax.f32 %v124, 0.0
    %s126 = sld [smem:[#allocation6 + $0x25]]
    %v127 = vstv %s126
    %v128 = vmul.f32 %v127, %v125
    %v129 = vadd.f32 %v90, %v128
    %s130 = sld [smem:[#allocation6 + $0x10]]
    %v131 = vstv %s130
    %v132 = vmul.f32 %v131, %v38
    %s133 = sld [smem:[#allocation6 + $0x11]]
    %v134 = vstv %s133
    %v135 = vmul.f32 %v134, %v40
    %v136 = vadd.f32 %v132, %v135
    %s137 = sld [smem:[#allocation6 + $0x12]]
    %v138 = vstv %s137
    %v139 = vmul.f32 %v138, %v42
    %v140 = vadd.f32 %v136, %v139
    %s141 = sld [smem:[#allocation6 + $0x13]]
    %v142 = vstv %s141
    %v143 = vmul.f32 %v142, %v44
    %v144 = vadd.f32 %v140, %v143
    %s145 = sld [smem:[#allocation6 + $0x14]]
    %v146 = vstv %s145
    %v147 = vmul.f32 %v146, %v46
    %v148 = vadd.f32 %v144, %v147
    %s149 = sld [smem:[#allocation6 + $0x15]]
    %v150 = vstv %s149
    %v151 = vmul.f32 %v150, %v48
    %v152 = vadd.f32 %v148, %v151
    %s153 = sld [smem:[#allocation6 + $0x16]]
    %v154 = vstv %s153
    %v155 = vmul.f32 %v154, %v50
    %v156 = vadd.f32 %v152, %v155
    %s157 = sld [smem:[#allocation6 + $0x17]]
    %v158 = vstv %s157
    %v159 = vmul.f32 %v158, %v52
    %v160 = vadd.f32 %v156, %v159
    %s161 = sld [smem:[#allocation6 + $0x22]]
    %v162 = vstv %s161
    %v163 = vadd.f32 %v160, %v162
    %v164 = vmax.f32 %v163, 0.0
    %s165 = sld [smem:[#allocation6 + $0x26]]
    %v166 = vstv %s165
    %v167 = vmul.f32 %v166, %v164
    %v168 = vadd.f32 %v129, %v167
    %s169 = sld [smem:[#allocation6 + $0x18]]
    %v170 = vstv %s169
    %v171 = vmul.f32 %v170, %v38
    %s172 = sld [smem:[#allocation6 + $0x19]]
    %v173 = vstv %s172
    %v174 = vmul.f32 %v173, %v40
    %v175 = vadd.f32 %v171, %v174
    %s176 = sld [smem:[#allocation6 + $0x1a]]
    %v177 = vstv %s176
    %v178 = vmul.f32 %v177, %v42
    %v179 = vadd.f32 %v175, %v178
    %s180 = sld [smem:[#allocation6 + $0x1b]]
    %v181 = vstv %s180
    %v182 = vmul.f32 %v181, %v44
    %v183 = vadd.f32 %v179, %v182
    %s184 = sld [smem:[#allocation6 + $0x1c]]
    %v185 = vstv %s184
    %v186 = vmul.f32 %v185, %v46
    %v187 = vadd.f32 %v183, %v186
    %s188 = sld [smem:[#allocation6 + $0x1d]]
    %v189 = vstv %s188
    %v190 = vmul.f32 %v189, %v48
    %v191 = vadd.f32 %v187, %v190
    %s192 = sld [smem:[#allocation6 + $0x1e]]
    %v193 = vstv %s192
    %v194 = vmul.f32 %v193, %v50
    %v195 = vadd.f32 %v191, %v194
    %s196 = sld [smem:[#allocation6 + $0x1f]]
    %v197 = vstv %s196
    %v198 = vmul.f32 %v197, %v52
    %v199 = vadd.f32 %v195, %v198
    %s200 = sld [smem:[#allocation6 + $0x23]]
    %v201 = vstv %s200
    %v202 = vadd.f32 %v199, %v201
    %v203 = vmax.f32 %v202, 0.0
    %s204 = sld [smem:[#allocation6 + $0x27]]
    %v205 = vstv %s204
    %v206 = vmul.f32 %v205, %v203
    %v207 = vadd.f32 %v168, %v206
    %s208 = sld [smem:[#allocation6 + $0x28]]
    %v209 = vstv %s208
    %v210 = vadd.f32 %v207, %v209
    %v211 = vmax.f32 %v210, 0.0
    %vm212 = vcmask 253952
    %213 = vst.msk [vmem:[#allocation7] sm:$0x1] %vm212, %v211
    // Predicated region
    $region18: #{tpu_custom_call.1} parent=1 // pred_check
      _
    $region19: #{tpu_custom_call.1} parent=1 // pred_check_branch
      %215 = sbr.rel (0) target = $region21
    $region20: #{tpu_custom_call.1} parent=1 // pred_region
      %s217 = ssub.s32 16, 16
      %218 = vsyncadd [#allocation4], %s217
      %s220 = sshll.u32 [#allocation7], 4
      %s221 = int_to_ptr.vmem [resolvable:$true] %s220
      %223 = dma.vmem_to_hbm [thread:$0]  %s221, 16, %s2, [#allocation4]
    $region21: #{tpu_custom_call.1} parent=1 // pred_fallthru
      _
    // Predicated region
    $region22: #{tpu_custom_call.1} parent=1 // pred_check
      _
    $region23: #{tpu_custom_call.1} parent=1 // pred_check_branch
      %225 = sbr.rel (0) target = $region25
    $region24: #{tpu_custom_call.1} parent=1 // pred_region
      %226 = dma.done [#allocation4], 16
    $region25: #{tpu_custom_call.1} parent=1 // pred_fallthru
      _
    %227 = vsyncpa [#allocation3], 1
    %228 = vsyncpa [#allocation4], 1
    %229 = vsyncpa [#allocation5], 1

</llo_original>
